<compile_context>
chip_gen: v5e
topology: v5e:2x2
jax: 0.10.0
libtpu: 0.0.40
codegen_flags: <defaults>
</compile_context>

<pallas_src>
import functools
import math

import jax
import jax.numpy as jnp
from jax.experimental import pallas as pl
from jax.experimental.pallas import tpu as pltpu


def _layernorm_kernel(x_ref, params_ref, o_ref, *, eps: float):
    # f32 compute regardless of storage dtype (no-op upcast for f32; required
    # widening on v5e which has no bf16 VPU/EUP).  HBM traffic stays at the
    # storage dtype width.
    x = x_ref[...].astype(jnp.float32)                       # (tm, hidden)
    mean = jnp.mean(x, axis=-1, keepdims=True)               # XLU reduce
    xc = x - mean                                            # reused below
    var = jnp.mean(xc * xc, axis=-1, keepdims=True)          # unbiased=False
    inv = jax.lax.rsqrt(var + eps)                           # EUP slot (cheap)
    scale = params_ref[0:1, :]                               # (1, hidden) f32
    shift = params_ref[1:2, :]
    # Padded rows of a partial last block may compute garbage here; their
    # stores are dropped by Pallas, so results are unaffected (benign).
    o_ref[...] = (xc * inv * scale + shift).astype(o_ref.dtype)


def _layernorm_xla(x, scale, shift, eps):
    xf = x.astype(jnp.float32)
    mean = jnp.mean(xf, axis=-1, keepdims=True)
    var = jnp.mean((xf - mean) ** 2, axis=-1, keepdims=True)
    y = (xf - mean) * jax.lax.rsqrt(var + eps) * scale.astype(jnp.float32) \
        + shift.astype(jnp.float32)
    return y.astype(x.dtype)


def _phys_vmem_bytes() -> int:
    try:
        kind = jax.devices()[0].device_kind.lower()
    except Exception:
        kind = ""
    if "v5" in kind or "v6" in kind:
        return 128 * 1024 * 1024          # v5e / v6e physical VMEM
    return 64 * 1024 * 1024               # v7x per-TC VMEM (and unknown: be safe)


def layernorm_pallas(x: jax.Array, scale: jax.Array, shift: jax.Array, *,
                     eps: float = 1e-5, block_rows: int | None = None,
                     lane_dense_only: bool = True) -> jax.Array:
    """LayerNorm over the last axis, matching the PyTorch module's forward."""
    orig_shape = x.shape
    hidden = orig_shape[-1]
    assert scale.shape == (hidden,) and shift.shape == (hidden,)
    eps = float(eps)

    # Output last-dim below/not-multiple-of 128 lanes => masked partial stores.
    # Typical transformer widths (768/1024/4096...) never hit this; for odd
    # sizes fall back to XLA rather than silently eating the penalty.
    if lane_dense_only and (hidden < 128 or hidden % 128 != 0):
        return _layernorm_xla(x, scale, shift, eps)

    rows = int(math.prod(orig_shape[:-1]))
    x2 = x.reshape(rows, hidden)
    # Pack affine params into one (2, hidden) f32 broadcast block.
    params = jnp.stack(
        [scale.astype(jnp.float32), shift.astype(jnp.float32)], axis=0)

    itemsize = x2.dtype.itemsize
    sub = {4: 8, 2: 16, 1: 32}.get(itemsize, 8)    # dtype sublane multiple
    # Per-block-row VMEM: in + out double-buffered at storage dtype, plus the
    # f32 intermediates the kernel body materializes (upcast / centered / y).
    f32_temps = 2 if itemsize == 4 else 3
    bytes_per_block_row = 4 * hidden * itemsize + f32_temps * hidden * 4

    phys_vmem = _phys_vmem_bytes()
    budget = int(0.65 * phys_vmem)

    if sub * bytes_per_block_row > budget:
        # TODO(synk): huge-hidden path should split hidden across a second
        # "arbitrary" grid axis with (tm, 1) running sum/sumsq accumulators;
        # fall back to XLA for now instead of failing to compile.
        return _layernorm_xla(x, scale, shift, eps)

    if block_rows is not None:
        tm = max(sub, (min(block_rows, rows) // sub) * sub)
    else:
        tm = max(1, budget // bytes_per_block_row)
        tm = min(tm, rows)
        if rows >= 2 * sub:
            tm = min(tm, pl.cdiv(rows, 2))     # keep >= 2 grid steps
        tm = max(sub, (tm // sub) * sub)
        # Prefer an even grid-step count so v7x's 2 TensorCores balance.
        steps = pl.cdiv(rows, tm)
        if steps > 1 and steps % 2 == 1:
            for cand in (tm - sub, tm + sub):
                if (cand >= sub and cand * bytes_per_block_row <= budget
                        and pl.cdiv(rows, cand) % 2 == 0):
                    tm = cand
                    break

    grid_rows = pl.cdiv(rows, tm)

    working = (4 * tm * hidden * itemsize        # in + out, double-buffered
               + f32_temps * tm * hidden * 4     # f32 intermediates
               + 2 * hidden * 4)                 # packed params
    vmem_limit = int(min(max(working + 4 * 1024 * 1024, 32 * 1024 * 1024),
                         int(0.85 * phys_vmem)))

    out = pl.pallas_call(
        functools.partial(_layernorm_kernel, eps=eps),
        out_shape=jax.ShapeDtypeStruct((rows, hidden), x.dtype),
        grid_spec=pltpu.PrefetchScalarGridSpec(
            num_scalar_prefetch=0,
            grid=(grid_rows,),
            in_specs=[
                pl.BlockSpec((tm, hidden), lambda i: (i, 0)),     # x row-tile
                pl.BlockSpec((2, hidden), lambda i: (0, 0)),      # scale/shift
            ],
            out_specs=pl.BlockSpec((tm, hidden), lambda i: (i, 0)),
        ),
        compiler_params=pltpu.CompilerParams(
            dimension_semantics=("parallel",),
            vmem_limit_bytes=vmem_limit,
        ),
    )(x2, params)

    return out.reshape(orig_shape)


def layernorm_ref(x, scale, shift, eps=1e-5):
    mean = jnp.mean(x, axis=-1, keepdims=True)
    var = jnp.mean((x - mean) ** 2, axis=-1, keepdims=True)   # unbiased=False
    return scale * ((x - mean) / jnp.sqrt(var + eps)) + shift


if __name__ == "__main__":
    key = jax.random.PRNGKey(0)
    kx, ks, kb, kx2 = jax.random.split(key, 4)

    # Primary (lane-dense) test: LayerNorm(emb_dim) on (batch, seq, emb_dim).
    batch, seq, hidden = 2, 8, 128
    x = jax.random.normal(kx, (batch, seq, hidden), dtype=jnp.float32)
    scale = 1.0 + 0.1 * jax.random.normal(ks, (hidden,), dtype=jnp.float32)
    shift = 0.1 * jax.random.normal(kb, (hidden,), dtype=jnp.float32)

    y = jax.block_until_ready(layernorm_pallas(x, scale, shift))
    y_ref = layernorm_ref(x, scale, shift)
    assert y.shape == x.shape and y.dtype == x.dtype
    assert jnp.allclose(y, y_ref, atol=1e-4, rtol=1e-4), "mismatch (lane-dense)"

    # Partial last row-block coverage (rows = 15, not a multiple of the tile).
    x_odd = jax.random.normal(kx2, (3, 5, hidden), dtype=jnp.float32)
    y_odd = jax.block_until_ready(layernorm_pallas(x_odd, scale, shift))
    assert jnp.allclose(y_odd, layernorm_ref(x_odd, scale, shift),
                        atol=1e-4, rtol=1e-4), "mismatch (partial block)"

    # Narrow hidden (32): forced Pallas path (masked stores) and default
    # XLA-fallback path both checked against the reference.
    hidden_s = 32
    xs = jax.random.normal(kx, (2, 8, hidden_s), dtype=jnp.float32)
    ss = 1.0 + 0.1 * jax.random.normal(ks, (hidden_s,), dtype=jnp.float32)
    bs = 0.1 * jax.random.normal(kb, (hidden_s,), dtype=jnp.float32)
    ys_forced = jax.block_until_ready(
        layernorm_pallas(xs, ss, bs, lane_dense_only=False))
    ys_fallback = jax.block_until_ready(layernorm_pallas(xs, ss, bs))
    ys_ref = layernorm_ref(xs, ss, bs)
    assert jnp.allclose(ys_forced, ys_ref, atol=1e-4, rtol=1e-4), "mismatch (narrow pallas)"
    assert jnp.allclose(ys_fallback, ys_ref, atol=1e-4, rtol=1e-4), "mismatch (narrow fallback)"

    print("KERNEL_OK")
</pallas_src>

<mosaic_0001>
module attributes {stable_mosaic.version = 11 : i64} {
  func.func @_layernorm_kernel(%arg0: i32, %arg1: memref<8x128xf32, #tpu.memory_space<vmem>>, %arg2: memref<2x128xf32, #tpu.memory_space<vmem>>, %arg3: memref<8x128xf32, #tpu.memory_space<vmem>>) attributes {dimension_semantics = [#tpu.dimension_semantics<parallel>], iteration_bounds = array<i64: 2>, scalar_prefetch = 0 : i64, scratch_operands = 0 : i64, tpu.core_type = #tpu.core_type<tc>, window_params = [{transform_indices = @transform_0, window_bounds = array<i64: 8, 128>}, {pipeline_mode = #tpu.pipeline_mode<synchronous>, transform_indices = @transform_1, window_bounds = array<i64: 2, 128>}, {transform_indices = @transform_2, window_bounds = array<i64: 8, 128>}]} {
    %c0 = arith.constant 0 : index
    %c0_0 = arith.constant 0 : index
    %0 = vector.load %arg1[%c0, %c0_0] : memref<8x128xf32, #tpu.memory_space<vmem>>, vector<8x128xf32>
    %cst = arith.constant dense<0.000000e+00> : vector<8xf32>
    %1 = vector.multi_reduction <add>, %0, %cst [1] : vector<8x128xf32> to vector<8xf32>
    %2 = vector.shape_cast %1 : vector<8xf32> to vector<8x1xf32>
    %cst_1 = arith.constant 1.280000e+02 : f32
    %3 = vector.broadcast %cst_1 : f32 to vector<8x1xf32>
    %4 = arith.divf %2, %3 : vector<8x1xf32>
    %5 = vector.broadcast %4 : vector<8x1xf32> to vector<8x128xf32>
    %6 = arith.subf %0, %5 : vector<8x128xf32>
    %7 = arith.mulf %6, %6 : vector<8x128xf32>
    %cst_2 = arith.constant dense<0.000000e+00> : vector<8xf32>
    %8 = vector.multi_reduction <add>, %7, %cst_2 [1] : vector<8x128xf32> to vector<8xf32>
    %9 = vector.shape_cast %8 : vector<8xf32> to vector<8x1xf32>
    %cst_3 = arith.constant 1.280000e+02 : f32
    %10 = vector.broadcast %cst_3 : f32 to vector<8x1xf32>
    %11 = arith.divf %9, %10 : vector<8x1xf32>
    %cst_4 = arith.constant 9.99999974E-6 : f32
    %12 = vector.broadcast %cst_4 : f32 to vector<8x1xf32>
    %13 = arith.addf %11, %12 : vector<8x1xf32>
    %14 = math.rsqrt %13 : vector<8x1xf32>
    %c0_5 = arith.constant 0 : index
    %c0_6 = arith.constant 0 : index
    %15 = vector.load %arg2[%c0_5, %c0_6] : memref<2x128xf32, #tpu.memory_space<vmem>>, vector<1x128xf32>
    %c1 = arith.constant 1 : index
    %c0_7 = arith.constant 0 : index
    %16 = vector.load %arg2[%c1, %c0_7] : memref<2x128xf32, #tpu.memory_space<vmem>>, vector<1x128xf32>
    %17 = vector.broadcast %14 : vector<8x1xf32> to vector<8x128xf32>
    %18 = arith.mulf %6, %17 : vector<8x128xf32>
    %19 = vector.broadcast %15 : vector<1x128xf32> to vector<8x128xf32>
    %20 = arith.mulf %18, %19 : vector<8x128xf32>
    %21 = vector.broadcast %16 : vector<1x128xf32> to vector<8x128xf32>
    %22 = arith.addf %20, %21 : vector<8x128xf32>
    %c0_8 = arith.constant 0 : index
    %c0_9 = arith.constant 0 : index
    %23 = vector.load %arg3[%c0_8, %c0_9] : memref<8x128xf32, #tpu.memory_space<vmem>>, vector<8x128xf32>
    tpu.vector_store %arg3[%c0_8, %c0_9], %22 {strides = array<i32>} : memref<8x128xf32, #tpu.memory_space<vmem>>, vector<8x128xf32>,
    return
  }
  func.func @transform_0(%arg0: i32) -> (i32, i32) {
    %c0_i32 = arith.constant 0 : i32
    %c0_i32_0 = arith.constant 0 : i32
    return %arg0, %c0_i32 : i32, i32
  }
  func.func @transform_1(%arg0: i32) -> (i32, i32) {
    %c0_i32 = arith.constant 0 : i32
    %c0_i32_0 = arith.constant 0 : i32
    %c0_i32_1 = arith.constant 0 : i32
    return %c0_i32, %c0_i32_0 : i32, i32
  }
  func.func @transform_2(%arg0: i32) -> (i32, i32) {
    %c0_i32 = arith.constant 0 : i32
    %c0_i32_0 = arith.constant 0 : i32
    return %arg0, %c0_i32 : i32, i32
  }
}

</mosaic_0001>

<llo_original>
// kernel: tpu_custom_call.1
$region0: #{tpu_custom_call.1}
  #allocation0 [shape = 'u32[]', space=smem, size = 0x4, offset = 0x4, fixed_abs, tag = 'smem constant byte address 0x4 - core index']
  #allocation1 [shape = 'u32[72,128]{1,0:T(1,128)}', space=vmem, size = 0x9000, scoped, tag = 'internal scratch']
  %s0 = inlined_call_operand.hbm [shape: f32[16,128], index: 0, kind: input, shape index: {}]
  %s1 = inlined_call_operand.hbm [shape: f32[2,128], index: 1, kind: input, shape index: {}]
  %s2 = inlined_call_operand.hbm [shape: f32[16,128], index: 2, kind: output, shape index: {}]
  %s3 = sld [smem:[#allocation0]]
  $region49: #{tpu_custom_call.1} parent=0
    _
  %s5 = ssub.s32 1, %s3
  %s6 = scalar_select 0, %s5, %s3
  $region1: #{tpu_custom_call.1} parent=0
    #allocation2 [shape = 'u8[8192]{0}', space=vmem, size = 0x2000, scoped, tag = 'input window, operand 0']
    #allocation3 [shape = 's32[2]{0}', space=sflag, size = 0x8, scoped, tag = 'scoped memory for tpu_custom_call.1']
    #allocation4 [shape = 's32[2]{0}', space=sflag, size = 0x8, scoped, tag = 'scoped memory for tpu_custom_call.1']
    #allocation5 [shape = 'u8[1024]{0}', space=vmem, size = 0x400, scoped, tag = 'input window, operand 1, single buffered']
    #allocation6 [shape = 's32[1]{0}', space=sflag, size = 0x4, scoped, tag = 'scoped memory for tpu_custom_call.1']
    #allocation7 [shape = 'u8[8192]{0}', space=vmem, size = 0x2000, scoped, tag = 'output window, operand 0']
    %7 = vsyncpa [#allocation3], 0
    %s8 = scalar_lea.sflag [#allocation3], 1
    %9 = vsyncpa %s8, 0
    %10 = vsyncpa [#allocation6], 0
    %11 = vsyncpa [#allocation4], 0
    %s12 = scalar_lea.sflag [#allocation4], 1
    %13 = vsyncpa %s12, 0
    loop: start=0, step=1, limit=4
    $region2: #{tpu_custom_call.1} parent=1 // loop_pre_header
      _
    $region3: #{tpu_custom_call.1} parent=1 // loop_header
      %s15 = sphi 0, %s19
      %p16 = scmp.ge.s32.totalorder %s15, 4
      %s25 = sphi 0, %s27
      %s28 = sphi 0, %s25
      %s29 = sphi 0, %s28
      %s45 = sphi 0, %s29
      %s49 = sphi 0, %s49
      %s51 = sphi 0, %s49
      %s52 = sphi 0, %s51
      %s66 = sphi 0, %s52
      %s72 = sphi 0, %s74
      %s75 = sphi 0, %s72
      %s76 = sphi 0, %s75
      %s92 = sphi 0, %s76
    $region4: #{tpu_custom_call.1} parent=1 // loop_header_branch
      %18 = sbr.rel (%p16) target = $region8
    $region5: #{tpu_custom_call.1} parent=1 // loop_body
      %s20 = ssub.s32 %s15, 1
      %s21 = ssub.s32 %s15, 2
      %s22 = sadd.s32 %s15, 1
      %s23 = ssub.s32 %s15, %s22
      %p24 = scmp.eq.s32.totalorder %s23, 0
      %s26 = sadd.s32 %s25, 1
      %s27 = scalar_select %p24, %s25, %s26
      %p30 = pneg %p24
      %p31 = scmp.eq.s32.totalorder %s15, 1
      %p32 = por %p30, %p31
      %p33 = scmp.ne.s32.totalorder %s25, %s28
      %p34 = scmp.eq.s32.totalorder %s15, 0
      %p35 = por %p33, %p34
      %p36 = scmp.ne.s32.totalorder %s25, %s28
      %p37 = scmp.eq.s32.totalorder %s20, 1
      %p38 = por %p36, %p37
      %p39 = scmp.ne.s32.totalorder %s28, %s29
      %p40 = scmp.eq.s32.totalorder %s20, 0
      %p41 = por %p39, %p40
      %p42 = scmp.ne.s32.totalorder %s28, %s29
      %p43 = scmp.eq.s32.totalorder %s21, 1
      %p44 = por %p42, %p43
      %p46 = scmp.ne.s32.totalorder %s29, %s45
      %p47 = scmp.eq.s32.totalorder %s21, 0
      %p48 = por %p46, %p47
      %s50 = sadd.s32 %s49, 1
      %p53 = scmp.eq.s32.totalorder %s15, 1
      %p54 = scmp.ne.s32.totalorder %s49, %s51
      %p55 = scmp.eq.s32.totalorder %s15, 0
      %p56 = por %p54, %p55
      %p57 = scmp.ne.s32.totalorder %s49, %s51
      %p58 = scmp.eq.s32.totalorder %s20, 1
      %p59 = por %p57, %p58
      %p60 = scmp.ne.s32.totalorder %s51, %s52
      %p61 = scmp.eq.s32.totalorder %s20, 0
      %p62 = por %p60, %p61
      %p63 = scmp.ne.s32.totalorder %s51, %s52
      %p64 = scmp.eq.s32.totalorder %s21, 1
      %p65 = por %p63, %p64
      %p67 = scmp.ne.s32.totalorder %s52, %s66
      %p68 = scmp.eq.s32.totalorder %s21, 0
      %p69 = por %p67, %p68
      %s70 = ssub.s32 %s15, %s22
      %p71 = scmp.eq.s32.totalorder %s70, 0
      %s73 = sadd.s32 %s72, 1
      %s74 = scalar_select %p71, %s72, %s73
      %p77 = pneg %p71
      %p78 = scmp.eq.s32.totalorder %s15, 1
      %p79 = por %p77, %p78
      %p80 = scmp.ne.s32.totalorder %s72, %s75
      %p81 = scmp.eq.s32.totalorder %s15, 0
      %p82 = por %p80, %p81
      %p83 = scmp.ne.s32.totalorder %s72, %s75
      %p84 = scmp.eq.s32.totalorder %s20, 1
      %p85 = por %p83, %p84
      %p86 = scmp.ne.s32.totalorder %s75, %s76
      %p87 = scmp.eq.s32.totalorder %s20, 0
      %p88 = por %p86, %p87
      %p89 = scmp.ne.s32.totalorder %s75, %s76
      %p90 = scmp.eq.s32.totalorder %s21, 1
      %p91 = por %p89, %p90
      %p93 = scmp.ne.s32.totalorder %s76, %s92
      %p94 = scmp.eq.s32.totalorder %s21, 0
      %p95 = por %p93, %p94
      %p96 = scmp.le.s32.totalorder 1, %s15
      %p97 = scmp.lt.s32.totalorder %s15, 3
      %p98 = pnand %p96, %p97
      %p99 = pneg %p98
      // Predicated region
      $region9: #{tpu_custom_call.1} parent=5 // pred_check
        _
      $region10: #{tpu_custom_call.1} parent=5 // pred_check_branch
        %101 = sbr.rel (%p98) target = $region12
      $region11: #{tpu_custom_call.1} parent=5 // pred_region
        %s102 = ssub.s32 %s15, 1
        // Predicated region
        $region13: #{tpu_custom_call.1} parent=11 // pred_check
          %p103 = pneg %p62
        $region14: #{tpu_custom_call.1} parent=11 // pred_check_branch
          %105 = sbr.rel (%p103) target = $region16
        $region15: #{tpu_custom_call.1} parent=11 // pred_region
          %107 = vsyncadd [#allocation6], 0
          %s109 = sshll.u32 %s1, 4
          %s110 = int_to_ptr.hbm [resolvable:$true] %s109
          %s111 = sshll.u32 [#allocation5], 4
          %s112 = int_to_ptr.vmem [resolvable:$true] %s111
          %114 = dma.hbm_to_vmem [thread:$0]  %s110, 32, %s112, [#allocation6]
        $region16: #{tpu_custom_call.1} parent=11 // pred_fallthru
          _
      $region12: #{tpu_custom_call.1} parent=5 // pred_fallthru
        _
      %p115 = scmp.lt.s32.totalorder %s15, 2
      // Predicated region
      $region17: #{tpu_custom_call.1} parent=5 // pred_check
        %p116 = pneg %p115
      $region18: #{tpu_custom_call.1} parent=5 // pred_check_branch
        %118 = sbr.rel (%p116) target = $region20
      $region19: #{tpu_custom_call.1} parent=5 // pred_region
        // Predicated region
        $region21: #{tpu_custom_call.1} parent=19 // pred_check
          %p119 = pneg %p35
        $region22: #{tpu_custom_call.1} parent=19 // pred_check_branch
          %121 = sbr.rel (%p119) target = $region24
        $region23: #{tpu_custom_call.1} parent=19 // pred_region
          %s122 = sand.u32 %s25, 1
          %s123 = scalar_lea.sflag [#allocation3], %s122
          %s124 = sand.u32 %s25, 1
          %s125 = smul.addr %s124, 8
          %s126 = scalar_lea.vmem [#allocation2], %s125
          %128 = vsyncadd %s123, 0
          %s129 = smul.addr %s15, 8
          %s130 = scalar_lea.hbm %s0, %s129
          %s132 = sshll.u32 %s130, 4
          %s133 = int_to_ptr.hbm [resolvable:$true] %s132
          %s134 = sshll.u32 %s126, 4
          %s135 = int_to_ptr.vmem [resolvable:$true] %s134
          %137 = dma.hbm_to_vmem [thread:$0]  %s133, 128, %s135, %s123
        $region24: #{tpu_custom_call.1} parent=19 // pred_fallthru
          _
      $region20: #{tpu_custom_call.1} parent=5 // pred_fallthru
        _
      %p138 = scmp.le.s32.totalorder 1, %s15
      %p139 = scmp.lt.s32.totalorder %s15, 3
      %p140 = pnand %p138, %p139
      %p141 = pneg %p140
      // Predicated region
      $region25: #{tpu_custom_call.1} parent=5 // pred_check
        _
      $region26: #{tpu_custom_call.1} parent=5 // pred_check_branch
        %143 = sbr.rel (%p140) target = $region28
      $region27: #{tpu_custom_call.1} parent=5 // pred_region
        %s144 = ssub.s32 %s15, 1
        %s145 = sand.u32 %s28, 1
        %s146 = scalar_lea.sflag [#allocation3], %s145
        %s147 = sand.u32 %s28, 1
        %s148 = smul.addr %s147, 8
        %s149 = scalar_lea.vmem [#allocation2], %s148
        // Predicated region
        $region29: #{tpu_custom_call.1} parent=27 // pred_check
          %p150 = pneg %p41
        $region30: #{tpu_custom_call.1} parent=27 // pred_check_branch
          %152 = sbr.rel (%p150) target = $region32
        $region31: #{tpu_custom_call.1} parent=27 // pred_region
          %154 = dma.done %s146, 128
        $region32: #{tpu_custom_call.1} parent=27 // pred_fallthru
          _
        // Predicated region
        $region33: #{tpu_custom_call.1} parent=27 // pred_check
          %p155 = pneg %p62
        $region34: #{tpu_custom_call.1} parent=27 // pred_check_branch
          %157 = sbr.rel (%p155) target = $region36
        $region35: #{tpu_custom_call.1} parent=27 // pred_region
          %159 = dma.done [#allocation6], 32
        $region36: #{tpu_custom_call.1} parent=27 // pred_fallthru
          _
        %s160 = sand.u32 %s28, 1
        %s161 = scalar_lea.sflag [#allocation3], %s160
        %s162 = sand.u32 %s28, 1
        %s163 = smul.addr %s162, 8
        %s164 = scalar_lea.vmem [#allocation2], %s163
        %p165 = pneg %p41
        %p166 = pneg %p38
        %p167 = pneg %p62
        %p168 = pneg %p59
        %p169 = pneg %p88
        %p170 = pneg %p85
        %s171 = sand.u32 %s75, 1
        %s172 = scalar_lea.sflag [#allocation4], %s171
        %s173 = sand.u32 %s75, 1
        %s174 = smul.addr %s173, 8
        %s175 = scalar_lea.vmem [#allocation7], %s174
        %v176 = vld [vmem:[%s149] sm:$0xff]
        %177 = vadd.xlane.f32.xlu0 %v176
        %v178 = vpop.xlane.xlu0 %177
        %v179 = vrcp.pop 128.0
        %v180 = vmul.f32 128.0, %v179
        %v181 = vsub.f32 1.0, %v180
        %v182 = vmul.f32 %v179, %v181
        %v183 = vadd.f32 %v179, %v182
        %vm184 = vweird.f32 %v179
        %v185 = vsel %vm184, %v179, %v183
        %v186 = vmul.f32 %v178, %v185
        %v187 = vsub.f32 %v176, %v186
        %v188 = vmul.f32 %v187, %v187
        %189 = vadd.xlane.f32.xlu0 %v188
        %v190 = vpop.xlane.xlu0 %189
        %v191 = vmul.f32 %v190, %v185
        %v192 = vadd.f32 %v191, 1e-05
        %v193 = vrsqrt.pop %v192
        %v194 = vmul.f32 %v193, %v192
        %v195 = vmul.f32 %v194, %v193
        %v196 = vmul.f32 0.5, %v195
        %v197 = vsub.f32 1.5, %v196
        %v198 = vmul.f32 %v193, %v197
        %vm199 = vweird.f32 %v192
        %vm200 = vweird.f32 %v193
        %vm201 = vmor %vm199, %vm200
        %v202 = vsel %vm201, %v193, %v198
        %v203 = vld [vmem:[#allocation5] sm:$0x1]
        %v204 = vld [vmem:[#allocation5 + $0x1] sm:$0x1]
        %v205 = vmul.f32 %v187, %v202
        %v206 = vperm.slane %v203, 0
        %v207 = vmul.f32 %v205, %v206
        %v208 = vperm.slane %v204, 0
        %v209 = vadd.f32 %v207, %v208
        %210 = vst [vmem:[%s175] sm:$0xff] %v209
        %s211 = sand.u32 %s75, 1
        %s212 = scalar_lea.sflag [#allocation4], %s211
        %s213 = sand.u32 %s75, 1
        %s214 = smul.addr %s213, 8
        %s215 = scalar_lea.vmem [#allocation7], %s214
        // Predicated region
        $region37: #{tpu_custom_call.1} parent=27 // pred_check
          %p216 = pneg %p85
        $region38: #{tpu_custom_call.1} parent=27 // pred_check_branch
          %218 = sbr.rel (%p216) target = $region40
        $region39: #{tpu_custom_call.1} parent=27 // pred_region
          %220 = vsyncadd %s212, 0
          %s221 = smul.addr %s20, 8
          %s222 = scalar_lea.hbm %s2, %s221
          %s224 = sshll.u32 %s215, 4
          %s225 = int_to_ptr.vmem [resolvable:$true] %s224
          %s226 = sshll.u32 %s222, 4
          %s227 = int_to_ptr.hbm [resolvable:$true] %s226
          %229 = dma.vmem_to_hbm [thread:$0]  %s225, 128, %s227, %s212
        $region40: #{tpu_custom_call.1} parent=27 // pred_fallthru
          _
      $region28: #{tpu_custom_call.1} parent=5 // pred_fallthru
        _
      %p230 = scmp.le.s32.totalorder 2, %s15
      // Predicated region
      $region41: #{tpu_custom_call.1} parent=5 // pred_check
        %p231 = pneg %p230
      $region42: #{tpu_custom_call.1} parent=5 // pred_check_branch
        %233 = sbr.rel (%p231) target = $region44
      $region43: #{tpu_custom_call.1} parent=5 // pred_region
        %s234 = ssub.s32 %s15, 2
        // Predicated region
        $region45: #{tpu_custom_call.1} parent=43 // pred_check
          %p235 = pneg %p91
        $region46: #{tpu_custom_call.1} parent=43 // pred_check_branch
          %237 = sbr.rel (%p235) target = $region48
        $region47: #{tpu_custom_call.1} parent=43 // pred_region
          %s238 = sand.u32 %s76, 1
          %s239 = scalar_lea.sflag [#allocation4], %s238
          %s240 = sand.u32 %s76, 1
          %s241 = smul.addr %s240, 8
          %s242 = scalar_lea.vmem [#allocation7], %s241
          %244 = dma.done %s239, 128
        $region48: #{tpu_custom_call.1} parent=43 // pred_fallthru
          _
      $region44: #{tpu_custom_call.1} parent=5 // pred_fallthru
        _
    $region6: #{tpu_custom_call.1} parent=1 // loop_footer
      %s19 = sadd.s32 1, %s15
    $region7: #{tpu_custom_call.1} parent=1 // loop_footer_branch
      %14 = sbr.rel target = $region3
    $region8: #{tpu_custom_call.1} parent=1 // loop_exit
      _
    %245 = vsyncpa [#allocation3], 1
    %s246 = scalar_lea.sflag [#allocation3], 1
    %247 = vsyncpa %s246, 1
    %248 = vsyncpa [#allocation6], 1
    %249 = vsyncpa [#allocation4], 1
    %s250 = scalar_lea.sflag [#allocation4], 1
    %251 = vsyncpa %s250, 1

</llo_original>
